<compile_context>
chip_gen: v7x
topology: tpu7x:2x2x1
jax: 0.10.0
libtpu: 0.0.40
codegen_flags: <defaults>
</compile_context>

<pallas_src>
import functools

import jax
import jax.numpy as jnp
import numpy as np
from jax.experimental import pallas as pl
from jax.experimental.pallas import tpu as pltpu

_EPS = 1e-5


def basic_block_kernel(x_ref, w1_ref, w2_ref, A_ref, g1_ref, b1_ref,
                       g2_ref, b2_ref, out_ref, patch_ref, *, cin):
    # x_ref:     (N, H, W*C)     input, x-major / channel-minor lane layout
    # w*_ref:    (3*W*C, W*C)    Toeplitz-banded conv weights (SAME pad in x)
    # A_ref:     (W*C, W*C)      channel-fold matrix (reduce over W + bcast)
    # g*/b*:     (1, W*C)        BN affine params tiled over W
    # out_ref:   (N, H, W*C)
    # patch_ref: (N, H, 3*W*C)   per-row halo buffer (input rows y-1, y, y+1)
    N, H, WC = x_ref.shape
    M = N * H
    inv_cnt = 1.0 / float(N * H * (WC // cin))   # 1 / (N*H*W) per-channel count

    A = A_ref[...]
    x = x_ref[...]

    # Zero once.  The rows never written below form the conv "SAME" y-halo for
    # BOTH convs (both convs overwrite exactly the same interior windows).
    patch_ref[...] = jnp.zeros(patch_ref.shape, patch_ref.dtype)

    def fill_patches(src_ref):
        # patch[n, y, dy*WC:(dy+1)*WC] = src[n, y + dy - 1, :]  (zero if OOB)
        for dy in range(3):
            oy = dy - 1
            yd0, yd1 = max(0, -oy), H + min(0, -oy)
            patch_ref[:, yd0:yd1, dy * WC:(dy + 1) * WC] = (
                src_ref[:, yd0 + oy:yd1 + oy, :])

    def conv(w_ref):
        p = patch_ref[...].reshape(M, 3 * WC)
        return jnp.dot(p, w_ref[...], preferred_element_type=jnp.float32)

    def bn_fold(acc, g, b):
        # Training-mode batch norm (biased var), folded into one FMA.
        # Sublane (row) sums are exact f32; the tiny A-matmul folds the W
        # lane-groups per channel and broadcasts the result across lanes.
        s = jnp.dot(jnp.sum(acc, axis=0, keepdims=True), A,
                    preferred_element_type=jnp.float32)
        sq = jnp.dot(jnp.sum(acc * acc, axis=0, keepdims=True), A,
                     preferred_element_type=jnp.float32)
        mu = s * inv_cnt
        var = sq * inv_cnt - mu * mu
        scale = g * jax.lax.rsqrt(var + _EPS)
        shift = b - mu * scale
        return acc * scale + shift

    # ---- conv1 -> bn1 -> relu ----
    fill_patches(x_ref)
    h = jnp.maximum(bn_fold(conv(w1_ref), g1_ref[...], b1_ref[...]), 0.0)

    # Stage h through out_ref so conv2's halo fill uses cheap ref slices.
    out_ref[...] = h.reshape(N, H, WC)

    # ---- conv2 -> bn2 -> +residual -> relu ----
    fill_patches(out_ref)
    out = bn_fold(conv(w2_ref), g2_ref[...], b2_ref[...]) + x.reshape(M, WC)
    out_ref[...] = jnp.maximum(out, 0.0).reshape(N, H, WC)


def _band_conv_weights(w_oihw, W):
    """OIHW 3x3 weight -> Toeplitz-banded (3*W*Cin, W*Cout) matmul weight.

    Row index = dy*W*Cin + xi*Cin + ci, col index = xo*Cout + co; value is
    w[dy, xi - xo + 1, ci, co] inside the 3-wide band, zero outside
    (=> SAME zero padding along x).
    """
    Cout, Cin, KH, KW = w_oihw.shape
    wh = jnp.transpose(w_oihw, (2, 3, 1, 0)).astype(jnp.float32)  # (KH,KW,Cin,Cout)
    sel = np.zeros((KW, W, W), np.float32)                        # static selector
    for dx in range(KW):
        for xo in range(W):
            xi = xo + dx - 1
            if 0 <= xi < W:
                sel[dx, xi, xo] = 1.0
    wt = jnp.einsum("kxo,dkcf->dxcof", jnp.asarray(sel), wh)      # (KH,W,Cin,W,Cout)
    return wt.reshape(KH * W * Cin, W * Cout)


def basic_block_forward(x_nchw, params):
    """NCHW torch-convention input -> NCHW output (stride=1, no downsample)."""
    w1, w2 = params["w1"], params["w2"]                            # OIHW
    N, C, H, W = x_nchw.shape
    # No-downsample BasicBlock: residual add requires inplanes == planes.
    assert w1.shape == (C, C, 3, 3) and w2.shape == (C, C, 3, 3)
    WC = W * C

    x = jnp.transpose(x_nchw, (0, 2, 3, 1)).astype(jnp.float32).reshape(N, H, WC)
    w1t = _band_conv_weights(w1, W)
    w2t = _band_conv_weights(w2, W)
    # Channel-fold matrix: A[w*C + c, w'*C + c'] = (c == c').
    A = jnp.asarray(np.tile(np.eye(C, dtype=np.float32), (W, W)))

    def tile_param(p):
        return jnp.tile(p.reshape(1, C).astype(jnp.float32), (1, W))

    g1, b1 = tile_param(params["g1"]), tile_param(params["b1"])
    g2, b2 = tile_param(params["g2"]), tile_param(params["b2"])

    out = pl.pallas_call(
        functools.partial(basic_block_kernel, cin=C),
        out_shape=jax.ShapeDtypeStruct((N, H, WC), jnp.float32),
        in_specs=[pl.BlockSpec(memory_space=pltpu.MemorySpace.VMEM)] * 8,
        out_specs=pl.BlockSpec(memory_space=pltpu.MemorySpace.VMEM),
        scratch_shapes=[pltpu.VMEM((N, H, 3 * WC), jnp.float32)],
    )(x, w1t, w2t, A, g1, b1, g2, b2)

    return jnp.transpose(out.reshape(N, H, W, C), (0, 3, 1, 2))    # NCHW


def ref_forward(x, w1, w2, g1, b1, g2, b2):
    """Pure-JAX reference mirroring the PyTorch BasicBlock forward (NCHW)."""
    dn = ("NCHW", "OIHW", "NCHW")

    def bn(y, g, b):
        mu = jnp.mean(y, axis=(0, 2, 3), keepdims=True)
        var = jnp.mean((y - mu) ** 2, axis=(0, 2, 3), keepdims=True)
        return ((y - mu) * jax.lax.rsqrt(var + _EPS)
                * g.reshape(1, -1, 1, 1) + b.reshape(1, -1, 1, 1))

    out = jax.lax.conv_general_dilated(x, w1, (1, 1), "SAME", dimension_numbers=dn)
    out = jnp.maximum(bn(out, g1, b1), 0.0)
    out = jax.lax.conv_general_dilated(out, w2, (1, 1), "SAME", dimension_numbers=dn)
    out = bn(out, g2, b2)
    return jnp.maximum(out + x, 0.0)


if __name__ == "__main__":
    # BasicBlock(inplanes=4, planes=4, BN_MOMENTUM=0.1, stride=1, downsample=None)
    N, C, H, W = 2, 4, 16, 16
    key = jax.random.PRNGKey(0)
    kx, k1, k2, kg1, kb1, kg2, kb2 = jax.random.split(key, 7)

    x = jax.random.normal(kx, (N, C, H, W), dtype=jnp.float32)
    params = {
        "w1": jax.random.normal(k1, (C, C, 3, 3), dtype=jnp.float32) * 0.2,  # OIHW
        "w2": jax.random.normal(k2, (C, C, 3, 3), dtype=jnp.float32) * 0.2,  # OIHW
        "g1": 1.0 + 0.1 * jax.random.normal(kg1, (C,), dtype=jnp.float32),
        "b1": 0.1 * jax.random.normal(kb1, (C,), dtype=jnp.float32),
        "g2": 1.0 + 0.1 * jax.random.normal(kg2, (C,), dtype=jnp.float32),
        "b2": 0.1 * jax.random.normal(kb2, (C,), dtype=jnp.float32),
    }

    out = jax.block_until_ready(basic_block_forward(x, params))

    ref = jax.block_until_ready(
        ref_forward(x, params["w1"], params["w2"],
                    params["g1"], params["b1"], params["g2"], params["b2"]))

    assert out.shape == (N, C, H, W)
    np.testing.assert_allclose(np.asarray(out), np.asarray(ref), rtol=1e-4, atol=1e-4)
    print("KERNEL_OK")
</pallas_src>

<mosaic_0001>
module attributes {stable_mosaic.version = 11 : i64} {
  func.func @basic_block_kernel(%arg0: memref<2x16x64xf32, #tpu.memory_space<vmem>>, %arg1: memref<192x64xf32, #tpu.memory_space<vmem>>, %arg2: memref<192x64xf32, #tpu.memory_space<vmem>>, %arg3: memref<64x64xf32, #tpu.memory_space<vmem>>, %arg4: memref<1x64xf32, #tpu.memory_space<vmem>>, %arg5: memref<1x64xf32, #tpu.memory_space<vmem>>, %arg6: memref<1x64xf32, #tpu.memory_space<vmem>>, %arg7: memref<1x64xf32, #tpu.memory_space<vmem>>, %arg8: memref<2x16x64xf32, #tpu.memory_space<vmem>>, %arg9: memref<2x16x192xf32, #tpu.memory_space<vmem>>) attributes {dimension_semantics = [], scalar_prefetch = 0 : i64, scratch_operands = 1 : i64, tpu.core_type = #tpu.core_type<tc>} {
    %c0 = arith.constant 0 : index
    %c0_0 = arith.constant 0 : index
    %0 = vector.load %arg3[%c0, %c0_0] : memref<64x64xf32, #tpu.memory_space<vmem>>, vector<64x64xf32>
    %c0_1 = arith.constant 0 : index
    %c0_2 = arith.constant 0 : index
    %c0_3 = arith.constant 0 : index
    %1 = vector.load %arg0[%c0_1, %c0_2, %c0_3] : memref<2x16x64xf32, #tpu.memory_space<vmem>>, vector<2x16x64xf32>
    %cst = arith.constant 0.000000e+00 : f32
    %2 = vector.broadcast %cst : f32 to vector<2x16x192xf32>
    %c0_4 = arith.constant 0 : index
    %c0_5 = arith.constant 0 : index
    %c0_6 = arith.constant 0 : index
    %3 = vector.load %arg9[%c0_4, %c0_5, %c0_6] : memref<2x16x192xf32, #tpu.memory_space<vmem>>, vector<2x16x192xf32>
    tpu.vector_store %arg9[%c0_4, %c0_5, %c0_6], %2 {strides = array<i32>} : memref<2x16x192xf32, #tpu.memory_space<vmem>>, vector<2x16x192xf32>,
    %c0_7 = arith.constant 0 : index
    %c0_8 = arith.constant 0 : index
    %c0_9 = arith.constant 0 : index
    %4 = vector.load %arg0[%c0_7, %c0_8, %c0_9] : memref<2x16x64xf32, #tpu.memory_space<vmem>>, vector<2x15x64xf32>
    %c0_10 = arith.constant 0 : index
    %c1 = arith.constant 1 : index
    %c0_11 = arith.constant 0 : index
    %5 = vector.load %arg9[%c0_10, %c1, %c0_11] : memref<2x16x192xf32, #tpu.memory_space<vmem>>, vector<2x15x64xf32>
    tpu.vector_store %arg9[%c0_10, %c1, %c0_11], %4 {strides = array<i32>} : memref<2x16x192xf32, #tpu.memory_space<vmem>>, vector<2x15x64xf32>,
    %c0_12 = arith.constant 0 : index
    %c0_13 = arith.constant 0 : index
    %c0_14 = arith.constant 0 : index
    %6 = vector.load %arg0[%c0_12, %c0_13, %c0_14] : memref<2x16x64xf32, #tpu.memory_space<vmem>>, vector<2x16x64xf32>
    %c0_15 = arith.constant 0 : index
    %c0_16 = arith.constant 0 : index
    %c64 = arith.constant 64 : index
    %7 = vector.load %arg9[%c0_15, %c0_16, %c64] : memref<2x16x192xf32, #tpu.memory_space<vmem>>, vector<2x16x64xf32>
    tpu.vector_store %arg9[%c0_15, %c0_16, %c64], %6 {strides = array<i32>} : memref<2x16x192xf32, #tpu.memory_space<vmem>>, vector<2x16x64xf32>,
    %c0_17 = arith.constant 0 : index
    %c1_18 = arith.constant 1 : index
    %c0_19 = arith.constant 0 : index
    %8 = vector.load %arg0[%c0_17, %c1_18, %c0_19] : memref<2x16x64xf32, #tpu.memory_space<vmem>>, vector<2x15x64xf32>
    %c0_20 = arith.constant 0 : index
    %c0_21 = arith.constant 0 : index
    %c128 = arith.constant 128 : index
    %9 = vector.load %arg9[%c0_20, %c0_21, %c128] : memref<2x16x192xf32, #tpu.memory_space<vmem>>, vector<2x15x64xf32>
    tpu.vector_store %arg9[%c0_20, %c0_21, %c128], %8 {strides = array<i32>} : memref<2x16x192xf32, #tpu.memory_space<vmem>>, vector<2x15x64xf32>,
    %c0_22 = arith.constant 0 : index
    %c0_23 = arith.constant 0 : index
    %c0_24 = arith.constant 0 : index
    %10 = vector.load %arg9[%c0_22, %c0_23, %c0_24] : memref<2x16x192xf32, #tpu.memory_space<vmem>>, vector<2x16x192xf32>
    %11 = vector.shape_cast %10 : vector<2x16x192xf32> to vector<32x192xf32>
    %c0_25 = arith.constant 0 : index
    %c0_26 = arith.constant 0 : index
    %12 = vector.load %arg1[%c0_25, %c0_26] : memref<192x64xf32, #tpu.memory_space<vmem>>, vector<192x64xf32>
    %cst_27 = arith.constant dense<0.000000e+00> : vector<32x64xf32>
    %13 = tpu.matmul %11, %12, %cst_27 {dimension_numbers = #tpu.dot_dimension_numbers<[1], [0], [0], [1], [0, 0, 1, 1], [], []>} : vector<32x192xf32>, vector<192x64xf32>, vector<32x64xf32> -> vector<32x64xf32>
    %c0_28 = arith.constant 0 : index
    %c0_29 = arith.constant 0 : index
    %14 = vector.load %arg4[%c0_28, %c0_29] : memref<1x64xf32, #tpu.memory_space<vmem>>, vector<1x64xf32>
    %c0_30 = arith.constant 0 : index
    %c0_31 = arith.constant 0 : index
    %15 = vector.load %arg5[%c0_30, %c0_31] : memref<1x64xf32, #tpu.memory_space<vmem>>, vector<1x64xf32>
    %cst_32 = arith.constant dense<0.000000e+00> : vector<64xf32>
    %16 = vector.multi_reduction <add>, %13, %cst_32 [0] : vector<32x64xf32> to vector<64xf32>
    %17 = vector.shape_cast %16 : vector<64xf32> to vector<1x64xf32>
    %cst_33 = arith.constant dense<0.000000e+00> : vector<1x64xf32>
    %18 = tpu.matmul %17, %0, %cst_33 {dimension_numbers = #tpu.dot_dimension_numbers<[1], [0], [0], [1], [0, 0, 1, 1], [], []>} : vector<1x64xf32>, vector<64x64xf32>, vector<1x64xf32> -> vector<1x64xf32>
    %19 = arith.mulf %13, %13 : vector<32x64xf32>
    %cst_34 = arith.constant dense<0.000000e+00> : vector<64xf32>
    %20 = vector.multi_reduction <add>, %19, %cst_34 [0] : vector<32x64xf32> to vector<64xf32>
    %21 = vector.shape_cast %20 : vector<64xf32> to vector<1x64xf32>
    %cst_35 = arith.constant dense<0.000000e+00> : vector<1x64xf32>
    %22 = tpu.matmul %21, %0, %cst_35 {dimension_numbers = #tpu.dot_dimension_numbers<[1], [0], [0], [1], [0, 0, 1, 1], [], []>} : vector<1x64xf32>, vector<64x64xf32>, vector<1x64xf32> -> vector<1x64xf32>
    %cst_36 = arith.constant 0.001953125 : f32
    %23 = vector.broadcast %cst_36 : f32 to vector<1x64xf32>
    %24 = arith.mulf %18, %23 : vector<1x64xf32>
    %cst_37 = arith.constant 0.001953125 : f32
    %25 = vector.broadcast %cst_37 : f32 to vector<1x64xf32>
    %26 = arith.mulf %22, %25 : vector<1x64xf32>
    %27 = arith.mulf %24, %24 : vector<1x64xf32>
    %28 = arith.subf %26, %27 : vector<1x64xf32>
    %cst_38 = arith.constant 9.99999974E-6 : f32
    %29 = vector.broadcast %cst_38 : f32 to vector<1x64xf32>
    %30 = arith.addf %28, %29 : vector<1x64xf32>
    %31 = math.rsqrt %30 : vector<1x64xf32>
    %32 = arith.mulf %14, %31 : vector<1x64xf32>
    %33 = arith.mulf %24, %32 : vector<1x64xf32>
    %34 = arith.subf %15, %33 : vector<1x64xf32>
    %35 = vector.broadcast %32 : vector<1x64xf32> to vector<32x64xf32>
    %36 = arith.mulf %13, %35 : vector<32x64xf32>
    %37 = vector.broadcast %34 : vector<1x64xf32> to vector<32x64xf32>
    %38 = arith.addf %36, %37 : vector<32x64xf32>
    %cst_39 = arith.constant 0.000000e+00 : f32
    %39 = vector.broadcast %cst_39 : f32 to vector<32x64xf32>
    %40 = arith.maximumf %38, %39 : vector<32x64xf32>
    %41 = vector.shape_cast %40 : vector<32x64xf32> to vector<2x16x64xf32>
    %c0_40 = arith.constant 0 : index
    %c0_41 = arith.constant 0 : index
    %c0_42 = arith.constant 0 : index
    %42 = vector.load %arg8[%c0_40, %c0_41, %c0_42] : memref<2x16x64xf32, #tpu.memory_space<vmem>>, vector<2x16x64xf32>
    tpu.vector_store %arg8[%c0_40, %c0_41, %c0_42], %41 {strides = array<i32>} : memref<2x16x64xf32, #tpu.memory_space<vmem>>, vector<2x16x64xf32>,
    %c0_43 = arith.constant 0 : index
    %c0_44 = arith.constant 0 : index
    %c0_45 = arith.constant 0 : index
    %43 = vector.load %arg8[%c0_43, %c0_44, %c0_45] : memref<2x16x64xf32, #tpu.memory_space<vmem>>, vector<2x15x64xf32>
    %c0_46 = arith.constant 0 : index
    %c1_47 = arith.constant 1 : index
    %c0_48 = arith.constant 0 : index
    %44 = vector.load %arg9[%c0_46, %c1_47, %c0_48] : memref<2x16x192xf32, #tpu.memory_space<vmem>>, vector<2x15x64xf32>
    tpu.vector_store %arg9[%c0_46, %c1_47, %c0_48], %43 {strides = array<i32>} : memref<2x16x192xf32, #tpu.memory_space<vmem>>, vector<2x15x64xf32>,
    %c0_49 = arith.constant 0 : index
    %c0_50 = arith.constant 0 : index
    %c0_51 = arith.constant 0 : index
    %45 = vector.load %arg8[%c0_49, %c0_50, %c0_51] : memref<2x16x64xf32, #tpu.memory_space<vmem>>, vector<2x16x64xf32>
    %c0_52 = arith.constant 0 : index
    %c0_53 = arith.constant 0 : index
    %c64_54 = arith.constant 64 : index
    %46 = vector.load %arg9[%c0_52, %c0_53, %c64_54] : memref<2x16x192xf32, #tpu.memory_space<vmem>>, vector<2x16x64xf32>
    tpu.vector_store %arg9[%c0_52, %c0_53, %c64_54], %45 {strides = array<i32>} : memref<2x16x192xf32, #tpu.memory_space<vmem>>, vector<2x16x64xf32>,
    %c0_55 = arith.constant 0 : index
    %c1_56 = arith.constant 1 : index
    %c0_57 = arith.constant 0 : index
    %47 = vector.load %arg8[%c0_55, %c1_56, %c0_57] : memref<2x16x64xf32, #tpu.memory_space<vmem>>, vector<2x15x64xf32>
    %c0_58 = arith.constant 0 : index
    %c0_59 = arith.constant 0 : index
    %c128_60 = arith.constant 128 : index
    %48 = vector.load %arg9[%c0_58, %c0_59, %c128_60] : memref<2x16x192xf32, #tpu.memory_space<vmem>>, vector<2x15x64xf32>
    tpu.vector_store %arg9[%c0_58, %c0_59, %c128_60], %47 {strides = array<i32>} : memref<2x16x192xf32, #tpu.memory_space<vmem>>, vector<2x15x64xf32>,
    %c0_61 = arith.constant 0 : index
    %c0_62 = arith.constant 0 : index
    %c0_63 = arith.constant 0 : index
    %49 = vector.load %arg9[%c0_61, %c0_62, %c0_63] : memref<2x16x192xf32, #tpu.memory_space<vmem>>, vector<2x16x192xf32>
    %50 = vector.shape_cast %49 : vector<2x16x192xf32> to vector<32x192xf32>
    %c0_64 = arith.constant 0 : index
    %c0_65 = arith.constant 0 : index
    %51 = vector.load %arg2[%c0_64, %c0_65] : memref<192x64xf32, #tpu.memory_space<vmem>>, vector<192x64xf32>
    %cst_66 = arith.constant dense<0.000000e+00> : vector<32x64xf32>
    %52 = tpu.matmul %50, %51, %cst_66 {dimension_numbers = #tpu.dot_dimension_numbers<[1], [0], [0], [1], [0, 0, 1, 1], [], []>} : vector<32x192xf32>, vector<192x64xf32>, vector<32x64xf32> -> vector<32x64xf32>
    %c0_67 = arith.constant 0 : index
    %c0_68 = arith.constant 0 : index
    %53 = vector.load %arg6[%c0_67, %c0_68] : memref<1x64xf32, #tpu.memory_space<vmem>>, vector<1x64xf32>
    %c0_69 = arith.constant 0 : index
    %c0_70 = arith.constant 0 : index
    %54 = vector.load %arg7[%c0_69, %c0_70] : memref<1x64xf32, #tpu.memory_space<vmem>>, vector<1x64xf32>
    %cst_71 = arith.constant dense<0.000000e+00> : vector<64xf32>
    %55 = vector.multi_reduction <add>, %52, %cst_71 [0] : vector<32x64xf32> to vector<64xf32>
    %56 = vector.shape_cast %55 : vector<64xf32> to vector<1x64xf32>
    %cst_72 = arith.constant dense<0.000000e+00> : vector<1x64xf32>
    %57 = tpu.matmul %56, %0, %cst_72 {dimension_numbers = #tpu.dot_dimension_numbers<[1], [0], [0], [1], [0, 0, 1, 1], [], []>} : vector<1x64xf32>, vector<64x64xf32>, vector<1x64xf32> -> vector<1x64xf32>
    %58 = arith.mulf %52, %52 : vector<32x64xf32>
    %cst_73 = arith.constant dense<0.000000e+00> : vector<64xf32>
    %59 = vector.multi_reduction <add>, %58, %cst_73 [0] : vector<32x64xf32> to vector<64xf32>
    %60 = vector.shape_cast %59 : vector<64xf32> to vector<1x64xf32>
    %cst_74 = arith.constant dense<0.000000e+00> : vector<1x64xf32>
    %61 = tpu.matmul %60, %0, %cst_74 {dimension_numbers = #tpu.dot_dimension_numbers<[1], [0], [0], [1], [0, 0, 1, 1], [], []>} : vector<1x64xf32>, vector<64x64xf32>, vector<1x64xf32> -> vector<1x64xf32>
    %cst_75 = arith.constant 0.001953125 : f32
    %62 = vector.broadcast %cst_75 : f32 to vector<1x64xf32>
    %63 = arith.mulf %57, %62 : vector<1x64xf32>
    %cst_76 = arith.constant 0.001953125 : f32
    %64 = vector.broadcast %cst_76 : f32 to vector<1x64xf32>
    %65 = arith.mulf %61, %64 : vector<1x64xf32>
    %66 = arith.mulf %63, %63 : vector<1x64xf32>
    %67 = arith.subf %65, %66 : vector<1x64xf32>
    %cst_77 = arith.constant 9.99999974E-6 : f32
    %68 = vector.broadcast %cst_77 : f32 to vector<1x64xf32>
    %69 = arith.addf %67, %68 : vector<1x64xf32>
    %70 = math.rsqrt %69 : vector<1x64xf32>
    %71 = arith.mulf %53, %70 : vector<1x64xf32>
    %72 = arith.mulf %63, %71 : vector<1x64xf32>
    %73 = arith.subf %54, %72 : vector<1x64xf32>
    %74 = vector.broadcast %71 : vector<1x64xf32> to vector<32x64xf32>
    %75 = arith.mulf %52, %74 : vector<32x64xf32>
    %76 = vector.broadcast %73 : vector<1x64xf32> to vector<32x64xf32>
    %77 = arith.addf %75, %76 : vector<32x64xf32>
    %78 = vector.shape_cast %1 : vector<2x16x64xf32> to vector<32x64xf32>
    %79 = arith.addf %77, %78 : vector<32x64xf32>
    %cst_78 = arith.constant 0.000000e+00 : f32
    %80 = vector.broadcast %cst_78 : f32 to vector<32x64xf32>
    %81 = arith.maximumf %79, %80 : vector<32x64xf32>
    %82 = vector.shape_cast %81 : vector<32x64xf32> to vector<2x16x64xf32>
    %c0_79 = arith.constant 0 : index
    %c0_80 = arith.constant 0 : index
    %c0_81 = arith.constant 0 : index
    %83 = vector.load %arg8[%c0_79, %c0_80, %c0_81] : memref<2x16x64xf32, #tpu.memory_space<vmem>>, vector<2x16x64xf32>
    tpu.vector_store %arg8[%c0_79, %c0_80, %c0_81], %82 {strides = array<i32>} : memref<2x16x64xf32, #tpu.memory_space<vmem>>, vector<2x16x64xf32>,
    return
  }
}

</mosaic_0001>

<llo_original>
// kernel: tpu_custom_call.1
$region0: #{tpu_custom_call.1}
  #allocation0 [shape = 'u32[]', space=smem, size = 0x4, offset = 0x4, fixed_abs, tag = 'smem constant byte address 0x4 - core index']
  #allocation1 [shape = 'u32[144,128]{1,0:T(1,128)}', space=vmem, size = 0x12000, scoped, tag = 'internal scratch']
  #allocation2 [shape = 'f32[2,16,192]{2,1,0:T(8,128)}', space=vmem, size = 0x8000, scoped, tag = 'scratch operand']
  %s0 = inlined_call_operand.vmem [shape: f32[2,16,64], index: 0, kind: input, shape index: {}]
  %s1 = inlined_call_operand.vmem [shape: f32[192,64], index: 1, kind: input, shape index: {}]
  %s2 = inlined_call_operand.vmem [shape: f32[192,64], index: 2, kind: input, shape index: {}]
  %s3 = inlined_call_operand.vmem [shape: f32[64,64], index: 3, kind: input, shape index: {}]
  %s4 = inlined_call_operand.vmem [shape: f32[1,64], index: 4, kind: input, shape index: {}]
  %s5 = inlined_call_operand.vmem [shape: f32[1,64], index: 5, kind: input, shape index: {}]
  %s6 = inlined_call_operand.vmem [shape: f32[1,64], index: 6, kind: input, shape index: {}]
  %s7 = inlined_call_operand.vmem [shape: f32[1,64], index: 7, kind: input, shape index: {}]
  %s8 = inlined_call_operand.hbm [shape: f32[2,16,64], index: 8, kind: output, shape index: {}]
  %s9 = sld [smem:[#allocation0]]
  $region42: #{tpu_custom_call.1} parent=0
    _
  %s11 = ssub.s32 1, %s9
  %s12 = scalar_select 0, %s11, %s9
  $region1: #{tpu_custom_call.1} parent=0
    #allocation3 [shape = 'u8[16384]{0}', space=vmem, size = 0x4000, scoped, tag = 'output window, operand 0, single buffered']
    #allocation4 [shape = 's32[1]{0}', space=sflag, size = 0x4, scoped, tag = 'scoped memory for tpu_custom_call.1']
    %13 = vsyncpa [#allocation4], 0
    // Predicated region
    $region2: #{tpu_custom_call.1} parent=1 // pred_check
      _
    $region3: #{tpu_custom_call.1} parent=1 // pred_check_branch
      %15 = sbr.rel (0) target = $region5
    $region4: #{tpu_custom_call.1} parent=1 // pred_region
      _
    $region5: #{tpu_custom_call.1} parent=1 // pred_fallthru
      _
    // Predicated region
    $region6: #{tpu_custom_call.1} parent=1 // pred_check
      _
    $region7: #{tpu_custom_call.1} parent=1 // pred_check_branch
      %17 = sbr.rel (0) target = $region9
    $region8: #{tpu_custom_call.1} parent=1 // pred_region
      _
    $region9: #{tpu_custom_call.1} parent=1 // pred_fallthru
      _
    // Predicated region
    $region10: #{tpu_custom_call.1} parent=1 // pred_check
      _
    $region11: #{tpu_custom_call.1} parent=1 // pred_check_branch
      %19 = sbr.rel (0) target = $region13
    $region12: #{tpu_custom_call.1} parent=1 // pred_region
      _
    $region13: #{tpu_custom_call.1} parent=1 // pred_fallthru
      _
    // Predicated region
    $region14: #{tpu_custom_call.1} parent=1 // pred_check
      _
    $region15: #{tpu_custom_call.1} parent=1 // pred_check_branch
      %21 = sbr.rel (0) target = $region17
    $region16: #{tpu_custom_call.1} parent=1 // pred_region
      _
    $region17: #{tpu_custom_call.1} parent=1 // pred_fallthru
      _
    // Predicated region
    $region18: #{tpu_custom_call.1} parent=1 // pred_check
      _
    $region19: #{tpu_custom_call.1} parent=1 // pred_check_branch
      %23 = sbr.rel (0) target = $region21
    $region20: #{tpu_custom_call.1} parent=1 // pred_region
      _
    $region21: #{tpu_custom_call.1} parent=1 // pred_fallthru
      _
    // Predicated region
    $region22: #{tpu_custom_call.1} parent=1 // pred_check
      _
    $region23: #{tpu_custom_call.1} parent=1 // pred_check_branch
      %25 = sbr.rel (0) target = $region25
    $region24: #{tpu_custom_call.1} parent=1 // pred_region
      _
    $region25: #{tpu_custom_call.1} parent=1 // pred_fallthru
      _
    // Predicated region
    $region26: #{tpu_custom_call.1} parent=1 // pred_check
      _
    $region27: #{tpu_custom_call.1} parent=1 // pred_check_branch
      %27 = sbr.rel (0) target = $region29
    $region28: #{tpu_custom_call.1} parent=1 // pred_region
      _
    $region29: #{tpu_custom_call.1} parent=1 // pred_fallthru
      _
    // Predicated region
    $region30: #{tpu_custom_call.1} parent=1 // pred_check
      _
    $region31: #{tpu_custom_call.1} parent=1 // pred_check_branch
      %29 = sbr.rel (0) target = $region33
    $region32: #{tpu_custom_call.1} parent=1 // pred_region
      _
    $region33: #{tpu_custom_call.1} parent=1 // pred_fallthru
      _
    %v30 = vld [vmem:[%s3] sm:$0xff]
    %v31 = vld [vmem:[%s3 + $0x8] sm:$0xff]
    %v32 = vld [vmem:[%s3 + $0x10] sm:$0xff]
    %v33 = vld [vmem:[%s3 + $0x18] sm:$0xff]
    %v34 = vld [vmem:[%s3 + $0x20] sm:$0xff]
    %v35 = vld [vmem:[%s3 + $0x28] sm:$0xff]
    %v36 = vld [vmem:[%s3 + $0x30] sm:$0xff]
    %v37 = vld [vmem:[%s3 + $0x38] sm:$0xff]
    %v38 = vld [vmem:[%s0] sm:$0xff]
    %v39 = vld [vmem:[%s0 + $0x8] sm:$0xff]
    %v40 = vld [vmem:[%s0 + $0x10] sm:$0xff]
    %v41 = vld [vmem:[%s0 + $0x18] sm:$0xff]
    %42 = vst [vmem:[#allocation2] sm:$0xff] 0.0
    %vm43 = vcmask 523264
    %44 = vst.msk [vmem:[#allocation2 + $0x8] sm:$0xff] %vm43, 0.0
    %45 = vst [vmem:[#allocation2 + $0x10] sm:$0xff] 0.0
    %46 = vst.msk [vmem:[#allocation2 + $0x18] sm:$0xff] %vm43, 0.0
    %47 = vst [vmem:[#allocation2 + $0x20] sm:$0xff] 0.0
    %48 = vst.msk [vmem:[#allocation2 + $0x28] sm:$0xff] %vm43, 0.0
    %49 = vst [vmem:[#allocation2 + $0x30] sm:$0xff] 0.0
    %50 = vst.msk [vmem:[#allocation2 + $0x38] sm:$0xff] %vm43, 0.0
    %v51 = vld [vmem:[%s0] sm:$0xff]
    %v52 = vld [vmem:[%s0 + $0x8] sm:$0x7f]
    %v53 = vld [vmem:[%s0 + $0x10] sm:$0xff]
    %v54 = vld [vmem:[%s0 + $0x18] sm:$0x7f]
    %vm59 = vcmask 1040384
    %v60 = vrot.slane %v51, 7
    %v61 = vrot.slane %v52, 7
    %v62 = vsel %vm59, %v60, %v61
    %v63 = vrot.slane %v53, 7
    %v64 = vrot.slane %v54, 7
    %v65 = vsel %vm59, %v63, %v64
    %vm70 = vcmask 523265
    %71 = vst.msk [vmem:[#allocation2] sm:$0xfe] %vm70, %v60
    %72 = vst.msk [vmem:[#allocation2 + $0x10] sm:$0xff] %vm43, %v62
    %73 = vst.msk [vmem:[#allocation2 + $0x20] sm:$0xfe] %vm70, %v63
    %74 = vst.msk [vmem:[#allocation2 + $0x30] sm:$0xff] %vm43, %v65
    %v75 = vld [vmem:[%s0] sm:$0xff]
    %v76 = vld [vmem:[%s0 + $0x8] sm:$0xff]
    %v77 = vld [vmem:[%s0 + $0x10] sm:$0xff]
    %v78 = vld [vmem:[%s0 + $0x18] sm:$0xff]
    %83 = vrot.lane.b32.xlu0 %v75, 64
    %v84 = vpop.permute.xlu0 %83
    %85 = vrot.lane.b32.xlu0 %v76, 64
    %v86 = vpop.permute.xlu0 %85
    %87 = vrot.lane.b32.xlu0 %v77, 64
    %v88 = vpop.permute.xlu0 %87
    %89 = vrot.lane.b32.xlu0 %v78, 64
    %v90 = vpop.permute.xlu0 %89
    %vm95 = vcmask 1048064
    %96 = vst.msk [vmem:[#allocation2] sm:$0xff] %vm95, %v84
    %97 = vst.msk [vmem:[#allocation2 + $0x10] sm:$0xff] %vm95, %v86
    %98 = vst.msk [vmem:[#allocation2 + $0x20] sm:$0xff] %vm95, %v88
    %99 = vst.msk [vmem:[#allocation2 + $0x30] sm:$0xff] %vm95, %v90
    %v100 = vld [vmem:[%s0 + $0x1] sm:$0xff]
    %v101 = vld [vmem:[%s0 + $0x9] sm:$0x7f]
    %v102 = vld [vmem:[%s0 + $0x11] sm:$0xff]
    %v103 = vld [vmem:[%s0 + $0x19] sm:$0x7f]
    %104 = vst.msk [vmem:[#allocation2 + $0x8] sm:$0xff] %vm43, %v100
    %vm105 = vcmask 522240
    %106 = vst.msk [vmem:[#allocation2 + $0x18] sm:$0x7f] %vm105, %v101
    %107 = vst.msk [vmem:[#allocation2 + $0x28] sm:$0xff] %vm43, %v102
    %108 = vst.msk [vmem:[#allocation2 + $0x38] sm:$0x7f] %vm105, %v103
    %v109 = vld [vmem:[#allocation2] sm:$0xff]
    %v110 = vld [vmem:[#allocation2 + $0x8] sm:$0xff]
    %v111 = vld [vmem:[#allocation2 + $0x10] sm:$0xff]
    %v112 = vld [vmem:[#allocation2 + $0x18] sm:$0xff]
    %v113 = vld [vmem:[#allocation2 + $0x20] sm:$0xff]
    %v114 = vld [vmem:[#allocation2 + $0x28] sm:$0xff]
    %v115 = vld [vmem:[#allocation2 + $0x30] sm:$0xff]
    %v116 = vld [vmem:[#allocation2 + $0x38] sm:$0xff]
    %v117 = vld [vmem:[%s1] sm:$0xff]
    %v118 = vld [vmem:[%s1 + $0x8] sm:$0xff]
    %v119 = vld [vmem:[%s1 + $0x10] sm:$0xff]
    %v120 = vld [vmem:[%s1 + $0x18] sm:$0xff]
    %v121 = vld [vmem:[%s1 + $0x20] sm:$0xff]
    %v122 = vld [vmem:[%s1 + $0x28] sm:$0xff]
    %v123 = vld [vmem:[%s1 + $0x30] sm:$0xff]
    %v124 = vld [vmem:[%s1 + $0x38] sm:$0xff]
    %v125 = vld [vmem:[%s1 + $0x40] sm:$0xff]
    %v126 = vld [vmem:[%s1 + $0x48] sm:$0xff]
    %v127 = vld [vmem:[%s1 + $0x50] sm:$0xff]
    %v128 = vld [vmem:[%s1 + $0x58] sm:$0xff]
    %v129 = vld [vmem:[%s1 + $0x60] sm:$0xff]
    %v130 = vld [vmem:[%s1 + $0x68] sm:$0xff]
    %v131 = vld [vmem:[%s1 + $0x70] sm:$0xff]
    %v132 = vld [vmem:[%s1 + $0x78] sm:$0xff]
    %v133 = vld [vmem:[%s1 + $0x80] sm:$0xff]
    %v134 = vld [vmem:[%s1 + $0x88] sm:$0xff]
    %v135 = vld [vmem:[%s1 + $0x90] sm:$0xff]
    %v136 = vld [vmem:[%s1 + $0x98] sm:$0xff]
    %v137 = vld [vmem:[%s1 + $0xa0] sm:$0xff]
    %v138 = vld [vmem:[%s1 + $0xa8] sm:$0xff]
    %v139 = vld [vmem:[%s1 + $0xb0] sm:$0xff]
    %v140 = vld [vmem:[%s1 + $0xb8] sm:$0xff]
    %v142 = vsel %vm43, %v110, 0
    %v145 = vsel %vm43, %v112, 0
    %v148 = vsel %vm43, %v114, 0
    %v151 = vsel %vm43, %v116, 0
    %153 = vmatprep.subr.mxu0 0.0
    %154 = vmatpush1.msra.mxu0 %v117
    %155 = vmatprep.subr.mxu0 0.0
    %156 = vmatpush1.msra.mxu0 %v118
    %157 = vmatprep.subr.mxu0 0.0
    %158 = vmatpush1.msra.mxu0 %v119
    %159 = vmatprep.subr.mxu0 0.0
    %160 = vmatpush1.msra.mxu0 %v120
    %161 = vmatprep.subr.mxu0 0.0
    %162 = vmatpush1.msra.mxu0 %v121
    %163 = vmatprep.subr.mxu0 0.0
    %164 = vmatpush1.msra.mxu0 %v122
    %165 = vmatprep.subr.mxu0 0.0
    %166 = vmatpush1.msra.mxu0 %v123
    %167 = vmatprep.subr.mxu0 0.0
    %168 = vmatpush1.msra.mxu0 %v124
    %169 = vmatprep.subr.mxu0 0.0
    %170 = vmatpush1.msra.mxu0 %v125
    %171 = vmatprep.subr.mxu0 0.0
    %172 = vmatpush1.msra.mxu0 %v126
    %173 = vmatprep.subr.mxu0 0.0
    %174 = vmatpush1.msra.mxu0 %v127
    %175 = vmatprep.subr.mxu0 0.0
    %176 = vmatpush1.msra.mxu0 %v128
    %177 = vmatprep.subr.mxu0 0.0
    %178 = vmatpush1.msra.mxu0 %v129
    %179 = vmatprep.subr.mxu0 0.0
    %180 = vmatpush1.msra.mxu0 %v130
    %181 = vmatprep.subr.mxu0 0.0
    %182 = vmatpush1.msra.mxu0 %v131
    %183 = vmatprep.subr.mxu0 0.0
    %184 = vmatpush1.msra.mxu0 %v132
    %185 = vmatprep.subr.mxu0 0.0
    %186 = vmatpush1.msra.mxu0 %v133
    %187 = vmatprep.subr.mxu0 0.0
    %188 = vmatpush1.msra.mxu0 %v134
    %189 = vmatprep.subr.mxu0 0.0
    %190 = vmatpush1.msra.mxu0 %v135
    %191 = vmatprep.subr.mxu0 0.0
    %192 = vmatpush1.msra.mxu0 %v136
    %193 = vmatprep.subr.mxu0 0.0
    %194 = vmatpush1.msra.mxu0 %v137
    %195 = vmatprep.subr.mxu0 0.0
    %196 = vmatpush1.msra.mxu0 %v138
    %197 = vmatprep.subr.mxu0 0.0
    %198 = vmatpush1.msra.mxu0 %v139
    %199 = vmatprep.subr.mxu0 0.0
    %200 = vmatpush1.msra.mxu0 %v140
    %201 = vmatprep.subr.mxu0 0.0
    %202 = vmatpush1.msra.mxu0 0.0
    %203 = vmatprep.subr.mxu0 0.0
    %204 = vmatpush1.msra.mxu0 0.0
    %205 = vmatprep.subr.mxu0 0.0
    %206 = vmatpush1.msra.mxu0 0.0
    %207 = vmatprep.subr.mxu0 0.0
    %208 = vmatpush1.msra.mxu0 0.0
    %209 = vmatprep.subr.mxu0 0.0
    %210 = vmatpush1.msra.mxu0 0.0
    %211 = vmatprep.subr.mxu0 0.0
    %212 = vmatpush1.msra.mxu0 0.0
    %213 = vmatprep.subr.mxu0 0.0
    %214 = vmatpush1.msra.mxu0 0.0
    %215 = vmatprep.subr.mxu0 0.0
    %216 = vmatpush1.msra.mxu0 0.0
    %217 = vmatprep.mubr.f32.mxu0 %v142
    %218 = vmatmul.mubr.f32.gmra.mrb[0].mxu0 %v109
    %v219 = vpop.f32.mrb[0].mxu0
    %v220 = vadd.f32 0.0, %v219
    %v221 = vpop.f32.mrb[0].mxu0
    %222 = vmatprep.mubr.f32.mxu0 %v145
    %223 = vmatmul.mubr.f32.gmra.mrb[0].mxu0 %v111
    %v224 = vpop.f32.mrb[0].mxu0
    %v225 = vadd.f32 0.0, %v224
    %v226 = vpop.f32.mrb[0].mxu0
    %227 = vmatprep.mubr.f32.mxu0 %v148
    %228 = vmatmul.mubr.f32.gmra.mrb[0].mxu0 %v113
    %v229 = vpop.f32.mrb[0].mxu0
    %v230 = vadd.f32 0.0, %v229
    %v231 = vpop.f32.mrb[0].mxu0
    %232 = vmatprep.mubr.f32.mxu0 %v151
    %233 = vmatmul.mubr.f32.gmra.mrb[0].mxu0 %v115
    %v234 = vpop.f32.mrb[0].mxu0
    %v235 = vadd.f32 0.0, %v234
    %v236 = vpop.f32.mrb[0].mxu0
    %237 = vdwg.mxu0
    %v238 = vld [vmem:[%s4] sm:$0x1]
    %v239 = vld [vmem:[%s5] sm:$0x1]
    %v240 = vsel %vm43, %v220, 0.0
    %v241 = vsel %vm43, %v225, 0.0
    %v242 = vadd.f32 %v240, %v241
    %v243 = vsel %vm43, %v230, 0.0
    %v244 = vadd.f32 %v242, %v243
    %v245 = vsel %vm43, %v235, 0.0
    %v246 = vadd.f32 %v244, %v245
    %v247 = vrot.slane %v246, 4
    %v248 = vadd.f32 %v246, %v247
    %v249 = vrot.slane %v248, 2
    %v250 = vadd.f32 %v248, %v249
    %v251 = vrot.slane %v250, 1
    %v252 = vadd.f32 %v250, %v251
    %v254 = vsel %vm43, %v252, 0
    %256 = vmatprep.subr.mxu0 0.0
    %257 = vmatpush1.msra.mxu0 %v30
    %258 = vmatprep.subr.mxu0 0.0
    %259 = vmatpush1.msra.mxu0 %v31
    %260 = vmatprep.subr.mxu0 0.0
    %261 = vmatpush1.msra.mxu0 %v32
    %262 = vmatprep.subr.mxu0 0.0
    %263 = vmatpush1.msra.mxu0 %v33
    %264 = vmatprep.subr.mxu0 0.0
    %265 = vmatpush1.msra.mxu0 %v34
    %266 = vmatprep.subr.mxu0 0.0
    %267 = vmatpush1.msra.mxu0 %v35
    %268 = vmatprep.subr.mxu0 0.0
    %269 = vmatpush1.msra.mxu0 %v36
    %270 = vmatprep.subr.mxu0 0.0
    %271 = vmatpush1.msra.mxu0 %v37
    %272 = vmatprep.subr.mxu0 0.0
    %273 = vmatpush1.msra.mxu0 0.0
    %274 = vmatprep.subr.mxu0 0.0
    %275 = vmatpush1.msra.mxu0 0.0
    %276 = vmatprep.subr.mxu0 0.0
    %277 = vmatpush1.msra.mxu0 0.0
    %278 = vmatprep.subr.mxu0 0.0
    %279 = vmatpush1.msra.mxu0 0.0
    %280 = vmatprep.subr.mxu0 0.0
    %281 = vmatpush1.msra.mxu0 0.0
    %282 = vmatprep.subr.mxu0 0.0
    %283 = vmatpush1.msra.mxu0 0.0
    %284 = vmatprep.subr.mxu0 0.0
    %285 = vmatpush1.msra.mxu0 0.0
    %286 = vmatprep.subr.mxu0 0.0
    %287 = vmatpush1.msra.mxu0 0.0
    %288 = vmatprep.subr.mxu0 0.0
    %289 = vmatpush1.msra.mxu0 0.0
    %290 = vmatprep.subr.mxu0 0.0
    %291 = vmatpush1.msra.mxu0 0.0
    %292 = vmatprep.subr.mxu0 0.0
    %293 = vmatpush1.msra.mxu0 0.0
    %294 = vmatprep.subr.mxu0 0.0
    %295 = vmatpush1.msra.mxu0 0.0
    %296 = vmatprep.subr.mxu0 0.0
    %297 = vmatpush1.msra.mxu0 0.0
    %298 = vmatprep.subr.mxu0 0.0
    %299 = vmatpush1.msra.mxu0 0.0
    %300 = vmatprep.subr.mxu0 0.0
    %301 = vmatpush1.msra.mxu0 0.0
    %302 = vmatprep.subr.mxu0 0.0
    %303 = vmatpush1.msra.mxu0 0.0
    %304 = vmatprep.subr.mxu0 0.0
    %305 = vmatpush1.msra.mxu0 0.0
    %306 = vmatprep.subr.mxu0 0.0
    %307 = vmatpush1.msra.mxu0 0.0
    %308 = vmatprep.subr.mxu0 0.0
    %309 = vmatpush1.msra.mxu0 0.0
    %310 = vmatprep.subr.mxu0 0.0
    %311 = vmatpush1.msra.mxu0 0.0
    %312 = vmatprep.subr.mxu0 0.0
    %313 = vmatpush1.msra.mxu0 0.0
    %314 = vmatprep.subr.mxu0 0.0
    %315 = vmatpush1.msra.mxu0 0.0
    %316 = vmatprep.subr.mxu0 0.0
    %317 = vmatpush1.msra.mxu0 0.0
    %318 = vmatprep.subr.mxu0 0.0
    %319 = vmatpush1.msra.mxu0 0.0
    %320 = vmatprep.mubr.f32.mxu0 0.0
    %321 = vmatmul.mubr.f32.gmra.mrb[0].mxu0 %v254
    %v322 = vpop.f32.mrb[0].mxu0
    %v323 = vadd.f32 0.0, %v322
    %v324 = vpop.f32.mrb[0].mxu0
    %325 = vdwg.mxu0
    %v326 = vmul.f32 %v220, %v220
    %v327 = vmul.f32 %v225, %v225
    %v328 = vmul.f32 %v230, %v230
    %v329 = vmul.f32 %v235, %v235
    %v330 = vsel %vm43, %v326, 0.0
    %v331 = vsel %vm43, %v327, 0.0
    %v332 = vadd.f32 %v330, %v331
    %v333 = vsel %vm43, %v328, 0.0
    %v334 = vadd.f32 %v332, %v333
    %v335 = vsel %vm43, %v329, 0.0
    %v336 = vadd.f32 %v334, %v335
    %v337 = vrot.slane %v336, 4
    %v338 = vadd.f32 %v336, %v337
    %v339 = vrot.slane %v338, 2
    %v340 = vadd.f32 %v338, %v339
    %v341 = vrot.slane %v340, 1
    %v342 = vadd.f32 %v340, %v341
    %v344 = vsel %vm43, %v342, 0
    %346 = vmatprep.subr.mxu0 0.0
    %347 = vmatpush1.msra.mxu0 %v30
    %348 = vmatprep.subr.mxu0 0.0
    %349 = vmatpush1.msra.mxu0 %v31
    %350 = vmatprep.subr.mxu0 0.0
    %351 = vmatpush1.msra.mxu0 %v32
    %352 = vmatprep.subr.mxu0 0.0
    %353 = vmatpush1.msra.mxu0 %v33
    %354 = vmatprep.subr.mxu0 0.0
    %355 = vmatpush1.msra.mxu0 %v34
    %356 = vmatprep.subr.mxu0 0.0
    %357 = vmatpush1.msra.mxu0 %v35
    %358 = vmatprep.subr.mxu0 0.0
    %359 = vmatpush1.msra.mxu0 %v36
    %360 = vmatprep.subr.mxu0 0.0
    %361 = vmatpush1.msra.mxu0 %v37
    %362 = vmatprep.subr.mxu0 0.0
    %363 = vmatpush1.msra.mxu0 0.0
    %364 = vmatprep.subr.mxu0 0.0
    %365 = vmatpush1.msra.mxu0 0.0
    %366 = vmatprep.subr.mxu0 0.0
    %367 = vmatpush1.msra.mxu0 0.0
    %368 = vmatprep.subr.mxu0 0.0
    %369 = vmatpush1.msra.mxu0 0.0
    %370 = vmatprep.subr.mxu0 0.0
    %371 = vmatpush1.msra.mxu0 0.0
    %372 = vmatprep.subr.mxu0 0.0
    %373 = vmatpush1.msra.mxu0 0.0
    %374 = vmatprep.subr.mxu0 0.0
    %375 = vmatpush1.msra.mxu0 0.0
    %376 = vmatprep.subr.mxu0 0.0
    %377 = vmatpush1.msra.mxu0 0.0
    %378 = vmatprep.subr.mxu0 0.0
    %379 = vmatpush1.msra.mxu0 0.0
    %380 = vmatprep.subr.mxu0 0.0
    %381 = vmatpush1.msra.mxu0 0.0
    %382 = vmatprep.subr.mxu0 0.0
    %383 = vmatpush1.msra.mxu0 0.0
    %384 = vmatprep.subr.mxu0 0.0
    %385 = vmatpush1.msra.mxu0 0.0
    %386 = vmatprep.subr.mxu0 0.0
    %387 = vmatpush1.msra.mxu0 0.0
    %388 = vmatprep.subr.mxu0 0.0
    %389 = vmatpush1.msra.mxu0 0.0
    %390 = vmatprep.subr.mxu0 0.0
    %391 = vmatpush1.msra.mxu0 0.0
    %392 = vmatprep.subr.mxu0 0.0
    %393 = vmatpush1.msra.mxu0 0.0
    %394 = vmatprep.subr.mxu0 0.0
    %395 = vmatpush1.msra.mxu0 0.0
    %396 = vmatprep.subr.mxu0 0.0
    %397 = vmatpush1.msra.mxu0 0.0
    %398 = vmatprep.subr.mxu0 0.0
    %399 = vmatpush1.msra.mxu0 0.0
    %400 = vmatprep.subr.mxu0 0.0
    %401 = vmatpush1.msra.mxu0 0.0
    %402 = vmatprep.subr.mxu0 0.0
    %403 = vmatpush1.msra.mxu0 0.0
    %404 = vmatprep.subr.mxu0 0.0
    %405 = vmatpush1.msra.mxu0 0.0
    %406 = vmatprep.subr.mxu0 0.0
    %407 = vmatpush1.msra.mxu0 0.0
    %408 = vmatprep.subr.mxu0 0.0
    %409 = vmatpush1.msra.mxu0 0.0
    %410 = vmatprep.mubr.f32.mxu0 0.0
    %411 = vmatmul.mubr.f32.gmra.mrb[0].mxu0 %v344
    %v412 = vpop.f32.mrb[0].mxu0
    %v413 = vadd.f32 0.0, %v412
    %v414 = vpop.f32.mrb[0].mxu0
    %415 = vdwg.mxu0
    %v416 = vmul.f32 %v323, 0.001953125
    %v417 = vmul.f32 %v413, 0.001953125
    %v418 = vmul.f32 %v416, %v416
    %v419 = vsub.f32 %v417, %v418
    %v420 = vadd.f32 %v419, 1e-05
    %v421 = vrsqrt.pop %v420
    %v422 = vmul.f32 %v238, %v421
    %v423 = vmul.f32 %v416, %v422
    %v424 = vsub.f32 %v239, %v423
    %v426 = vlaneseq
    %v427 = vshrl.u32 %v426, 7
    %v428 = vsub.s32 0, %v427
    %v429 = vrot.slane %v422, %v428
    %v431 = vmul.f32 %v220, %v429
    %v432 = vmul.f32 %v225, %v429
    %v433 = vmul.f32 %v230, %v429
    %v434 = vmul.f32 %v235, %v429
    %v436 = vlaneseq
    %v437 = vshrl.u32 %v436, 7
    %v438 = vsub.s32 0, %v437
    %v439 = vrot.slane %v424, %v438
    %v441 = vadd.f32 %v431, %v439
    %v442 = vadd.f32 %v432, %v439
    %v443 = vadd.f32 %v433, %v439
    %v444 = vadd.f32 %v434, %v439
    %v445 = vmax.f32 %v441, 0.0
    %v446 = vmax.f32 %v442, 0.0
    %v447 = vmax.f32 %v443, 0.0
    %v448 = vmax.f32 %v444, 0.0
    %449 = vst.msk [vmem:[#allocation3] sm:$0xff] %vm43, %v445
    %450 = vst.msk [vmem:[#allocation3 + $0x8] sm:$0xff] %vm43, %v446
    %451 = vst.msk [vmem:[#allocation3 + $0x10] sm:$0xff] %vm43, %v447
    %452 = vst.msk [vmem:[#allocation3 + $0x18] sm:$0xff] %vm43, %v448
    %v453 = vld [vmem:[#allocation3] sm:$0xff]
    %v454 = vld [vmem:[#allocation3 + $0x8] sm:$0x7f]
    %v455 = vld [vmem:[#allocation3 + $0x10] sm:$0xff]
    %v456 = vld [vmem:[#allocation3 + $0x18] sm:$0x7f]
    %v461 = vrot.slane %v453, 7
    %v462 = vrot.slane %v454, 7
    %v463 = vsel %vm59, %v461, %v462
    %v464 = vrot.slane %v455, 7
    %v465 = vrot.slane %v456, 7
    %v466 = vsel %vm59, %v464, %v465
    %471 = vst.msk [vmem:[#allocation2] sm:$0xfe] %vm70, %v461
    %472 = vst.msk [vmem:[#allocation2 + $0x10] sm:$0xff] %vm43, %v463
    %473 = vst.msk [vmem:[#allocation2 + $0x20] sm:$0xfe] %vm70, %v464
    %474 = vst.msk [vmem:[#allocation2 + $0x30] sm:$0xff] %vm43, %v466
    %v475 = vld [vmem:[#allocation3] sm:$0xff]
    %v476 = vld [vmem:[#allocation3 + $0x8] sm:$0xff]
    %v477 = vld [vmem:[#allocation3 + $0x10] sm:$0xff]
    %v478 = vld [vmem:[#allocation3 + $0x18] sm:$0xff]
    %483 = vrot.lane.b32.xlu0 %v475, 64
    %v484 = vpop.permute.xlu0 %483
    %485 = vrot.lane.b32.xlu0 %v476, 64
    %v486 = vpop.permute.xlu0 %485
    %487 = vrot.lane.b32.xlu0 %v477, 64
    %v488 = vpop.permute.xlu0 %487
    %489 = vrot.lane.b32.xlu0 %v478, 64
    %v490 = vpop.permute.xlu0 %489
    %495 = vst.msk [vmem:[#allocation2] sm:$0xff] %vm95, %v484
    %496 = vst.msk [vmem:[#allocation2 + $0x10] sm:$0xff] %vm95, %v486
    %497 = vst.msk [vmem:[#allocation2 + $0x20] sm:$0xff] %vm95, %v488
    %498 = vst.msk [vmem:[#allocation2 + $0x30] sm:$0xff] %vm95, %v490
    %v499 = vld [vmem:[#allocation3 + $0x1] sm:$0xff]
    %v500 = vld [vmem:[#allocation3 + $0x9] sm:$0x7f]
    %v501 = vld [vmem:[#allocation3 + $0x11] sm:$0xff]
    %v502 = vld [vmem:[#allocation3 + $0x19] sm:$0x7f]
    %503 = vst.msk [vmem:[#allocation2 + $0x8] sm:$0xff] %vm43, %v499
    %504 = vst.msk [vmem:[#allocation2 + $0x18] sm:$0x7f] %vm105, %v500
    %505 = vst.msk [vmem:[#allocation2 + $0x28] sm:$0xff] %vm43, %v501
    %506 = vst.msk [vmem:[#allocation2 + $0x38] sm:$0x7f] %vm105, %v502
    %v507 = vld [vmem:[#allocation2] sm:$0xff]
    %v508 = vld [vmem:[#allocation2 + $0x8] sm:$0xff]
    %v509 = vld [vmem:[#allocation2 + $0x10] sm:$0xff]
    %v510 = vld [vmem:[#allocation2 + $0x18] sm:$0xff]
    %v511 = vld [vmem:[#allocation2 + $0x20] sm:$0xff]
    %v512 = vld [vmem:[#allocation2 + $0x28] sm:$0xff]
    %v513 = vld [vmem:[#allocation2 + $0x30] sm:$0xff]
    %v514 = vld [vmem:[#allocation2 + $0x38] sm:$0xff]
    %v515 = vld [vmem:[%s2] sm:$0xff]
    %v516 = vld [vmem:[%s2 + $0x8] sm:$0xff]
    %v517 = vld [vmem:[%s2 + $0x10] sm:$0xff]
    %v518 = vld [vmem:[%s2 + $0x18] sm:$0xff]
    %v519 = vld [vmem:[%s2 + $0x20] sm:$0xff]
    %v520 = vld [vmem:[%s2 + $0x28] sm:$0xff]
    %v521 = vld [vmem:[%s2 + $0x30] sm:$0xff]
    %v522 = vld [vmem:[%s2 + $0x38] sm:$0xff]
    %v523 = vld [vmem:[%s2 + $0x40] sm:$0xff]
    %v524 = vld [vmem:[%s2 + $0x48] sm:$0xff]
    %v525 = vld [vmem:[%s2 + $0x50] sm:$0xff]
    %v526 = vld [vmem:[%s2 + $0x58] sm:$0xff]
    %v527 = vld [vmem:[%s2 + $0x60] sm:$0xff]
    %v528 = vld [vmem:[%s2 + $0x68] sm:$0xff]
    %v529 = vld [vmem:[%s2 + $0x70] sm:$0xff]
    %v530 = vld [vmem:[%s2 + $0x78] sm:$0xff]
    %v531 = vld [vmem:[%s2 + $0x80] sm:$0xff]
    %v532 = vld [vmem:[%s2 + $0x88] sm:$0xff]
    %v533 = vld [vmem:[%s2 + $0x90] sm:$0xff]
    %v534 = vld [vmem:[%s2 + $0x98] sm:$0xff]
    %v535 = vld [vmem:[%s2 + $0xa0] sm:$0xff]
    %v536 = vld [vmem:[%s2 + $0xa8] sm:$0xff]
    %v537 = vld [vmem:[%s2 + $0xb0] sm:$0xff]
    %v538 = vld [vmem:[%s2 + $0xb8] sm:$0xff]
    %v540 = vsel %vm43, %v508, 0
    %v543 = vsel %vm43, %v510, 0
    %v546 = vsel %vm43, %v512, 0
    %v549 = vsel %vm43, %v514, 0
    %551 = vmatprep.subr.mxu0 0.0
    %552 = vmatpush1.msra.mxu0 %v515
    %553 = vmatprep.subr.mxu0 0.0
    %554 = vmatpush1.msra.mxu0 %v516
    %555 = vmatprep.subr.mxu0 0.0
    %556 = vmatpush1.msra.mxu0 %v517
    %557 = vmatprep.subr.mxu0 0.0
    %558 = vmatpush1.msra.mxu0 %v518
    %559 = vmatprep.subr.mxu0 0.0
    %560 = vmatpush1.msra.mxu0 %v519
    %561 = vmatprep.subr.mxu0 0.0
    %562 = vmatpush1.msra.mxu0 %v520
    %563 = vmatprep.subr.mxu0 0.0
    %564 = vmatpush1.msra.mxu0 %v521
    %565 = vmatprep.subr.mxu0 0.0
    %566 = vmatpush1.msra.mxu0 %v522
    %567 = vmatprep.subr.mxu0 0.0
    %568 = vmatpush1.msra.mxu0 %v523
    %569 = vmatprep.subr.mxu0 0.0
    %570 = vmatpush1.msra.mxu0 %v524
    %571 = vmatprep.subr.mxu0 0.0
    %572 = vmatpush1.msra.mxu0 %v525
    %573 = vmatprep.subr.mxu0 0.0
    %574 = vmatpush1.msra.mxu0 %v526
    %575 = vmatprep.subr.mxu0 0.0
    %576 = vmatpush1.msra.mxu0 %v527
    %577 = vmatprep.subr.mxu0 0.0
    %578 = vmatpush1.msra.mxu0 %v528
    %579 = vmatprep.subr.mxu0 0.0
    %580 = vmatpush1.msra.mxu0 %v529
    %581 = vmatprep.subr.mxu0 0.0
    %582 = vmatpush1.msra.mxu0 %v530
    %583 = vmatprep.subr.mxu0 0.0
    %584 = vmatpush1.msra.mxu0 %v531
    %585 = vmatprep.subr.mxu0 0.0
    %586 = vmatpush1.msra.mxu0 %v532
    %587 = vmatprep.subr.mxu0 0.0
    %588 = vmatpush1.msra.mxu0 %v533
    %589 = vmatprep.subr.mxu0 0.0
    %590 = vmatpush1.msra.mxu0 %v534
    %591 = vmatprep.subr.mxu0 0.0
    %592 = vmatpush1.msra.mxu0 %v535
    %593 = vmatprep.subr.mxu0 0.0
    %594 = vmatpush1.msra.mxu0 %v536
    %595 = vmatprep.subr.mxu0 0.0
    %596 = vmatpush1.msra.mxu0 %v537
    %597 = vmatprep.subr.mxu0 0.0
    %598 = vmatpush1.msra.mxu0 %v538
    %599 = vmatprep.subr.mxu0 0.0
    %600 = vmatpush1.msra.mxu0 0.0
    %601 = vmatprep.subr.mxu0 0.0
    %602 = vmatpush1.msra.mxu0 0.0
    %603 = vmatprep.subr.mxu0 0.0
    %604 = vmatpush1.msra.mxu0 0.0
    %605 = vmatprep.subr.mxu0 0.0
    %606 = vmatpush1.msra.mxu0 0.0
    %607 = vmatprep.subr.mxu0 0.0
    %608 = vmatpush1.msra.mxu0 0.0
    %609 = vmatprep.subr.mxu0 0.0
    %610 = vmatpush1.msra.mxu0 0.0
    %611 = vmatprep.subr.mxu0 0.0
    %612 = vmatpush1.msra.mxu0 0.0
    %613 = vmatprep.subr.mxu0 0.0
    %614 = vmatpush1.msra.mxu0 0.0
    %615 = vmatprep.mubr.f32.mxu0 %v540
    %616 = vmatmul.mubr.f32.gmra.mrb[0].mxu0 %v507
    %v617 = vpop.f32.mrb[0].mxu0
    %v618 = vadd.f32 0.0, %v617
    %v619 = vpop.f32.mrb[0].mxu0
    %620 = vmatprep.mubr.f32.mxu0 %v543
    %621 = vmatmul.mubr.f32.gmra.mrb[0].mxu0 %v509
    %v622 = vpop.f32.mrb[0].mxu0
    %v623 = vadd.f32 0.0, %v622
    %v624 = vpop.f32.mrb[0].mxu0
    %625 = vmatprep.mubr.f32.mxu0 %v546
    %626 = vmatmul.mubr.f32.gmra.mrb[0].mxu0 %v511
    %v627 = vpop.f32.mrb[0].mxu0
    %v628 = vadd.f32 0.0, %v627
    %v629 = vpop.f32.mrb[0].mxu0
    %630 = vmatprep.mubr.f32.mxu0 %v549
    %631 = vmatmul.mubr.f32.gmra.mrb[0].mxu0 %v513
    %v632 = vpop.f32.mrb[0].mxu0
    %v633 = vadd.f32 0.0, %v632
    %v634 = vpop.f32.mrb[0].mxu0
    %635 = vdwg.mxu0
    %v636 = vld [vmem:[%s6] sm:$0x1]
    %v637 = vld [vmem:[%s7] sm:$0x1]
    %v638 = vsel %vm43, %v618, 0.0
    %v639 = vsel %vm43, %v623, 0.0
    %v640 = vadd.f32 %v638, %v639
    %v641 = vsel %vm43, %v628, 0.0
    %v642 = vadd.f32 %v640, %v641
    %v643 = vsel %vm43, %v633, 0.0
    %v644 = vadd.f32 %v642, %v643
    %v645 = vrot.slane %v644, 4
    %v646 = vadd.f32 %v644, %v645
    %v647 = vrot.slane %v646, 2
    %v648 = vadd.f32 %v646, %v647
    %v649 = vrot.slane %v648, 1
    %v650 = vadd.f32 %v648, %v649
    %v652 = vsel %vm43, %v650, 0
    %654 = vmatprep.subr.mxu0 0.0
    %655 = vmatpush1.msra.mxu0 %v30
    %656 = vmatprep.subr.mxu0 0.0
    %657 = vmatpush1.msra.mxu0 %v31
    %658 = vmatprep.subr.mxu0 0.0
    %659 = vmatpush1.msra.mxu0 %v32
    %660 = vmatprep.subr.mxu0 0.0
    %661 = vmatpush1.msra.mxu0 %v33
    %662 = vmatprep.subr.mxu0 0.0
    %663 = vmatpush1.msra.mxu0 %v34
    %664 = vmatprep.subr.mxu0 0.0
    %665 = vmatpush1.msra.mxu0 %v35
    %666 = vmatprep.subr.mxu0 0.0
    %667 = vmatpush1.msra.mxu0 %v36
    %668 = vmatprep.subr.mxu0 0.0
    %669 = vmatpush1.msra.mxu0 %v37
    %670 = vmatprep.subr.mxu0 0.0
    %671 = vmatpush1.msra.mxu0 0.0
    %672 = vmatprep.subr.mxu0 0.0
    %673 = vmatpush1.msra.mxu0 0.0
    %674 = vmatprep.subr.mxu0 0.0
    %675 = vmatpush1.msra.mxu0 0.0
    %676 = vmatprep.subr.mxu0 0.0
    %677 = vmatpush1.msra.mxu0 0.0
    %678 = vmatprep.subr.mxu0 0.0
    %679 = vmatpush1.msra.mxu0 0.0
    %680 = vmatprep.subr.mxu0 0.0
    %681 = vmatpush1.msra.mxu0 0.0
    %682 = vmatprep.subr.mxu0 0.0
    %683 = vmatpush1.msra.mxu0 0.0
    %684 = vmatprep.subr.mxu0 0.0
    %685 = vmatpush1.msra.mxu0 0.0
    %686 = vmatprep.subr.mxu0 0.0
    %687 = vmatpush1.msra.mxu0 0.0
    %688 = vmatprep.subr.mxu0 0.0
    %689 = vmatpush1.msra.mxu0 0.0
    %690 = vmatprep.subr.mxu0 0.0
    %691 = vmatpush1.msra.mxu0 0.0
    %692 = vmatprep.subr.mxu0 0.0
    %693 = vmatpush1.msra.mxu0 0.0
    %694 = vmatprep.subr.mxu0 0.0
    %695 = vmatpush1.msra.mxu0 0.0
    %696 = vmatprep.subr.mxu0 0.0
    %697 = vmatpush1.msra.mxu0 0.0
    %698 = vmatprep.subr.mxu0 0.0
    %699 = vmatpush1.msra.mxu0 0.0
    %700 = vmatprep.subr.mxu0 0.0
    %701 = vmatpush1.msra.mxu0 0.0
    %702 = vmatprep.subr.mxu0 0.0
    %703 = vmatpush1.msra.mxu0 0.0
    %704 = vmatprep.subr.mxu0 0.0
    %705 = vmatpush1.msra.mxu0 0.0
    %706 = vmatprep.subr.mxu0 0.0
    %707 = vmatpush1.msra.mxu0 0.0
    %708 = vmatprep.subr.mxu0 0.0
    %709 = vmatpush1.msra.mxu0 0.0
    %710 = vmatprep.subr.mxu0 0.0
    %711 = vmatpush1.msra.mxu0 0.0
    %712 = vmatprep.subr.mxu0 0.0
    %713 = vmatpush1.msra.mxu0 0.0
    %714 = vmatprep.subr.mxu0 0.0
    %715 = vmatpush1.msra.mxu0 0.0
    %716 = vmatprep.subr.mxu0 0.0
    %717 = vmatpush1.msra.mxu0 0.0
    %718 = vmatprep.mubr.f32.mxu0 0.0
    %719 = vmatmul.mubr.f32.gmra.mrb[0].mxu0 %v652
    %v720 = vpop.f32.mrb[0].mxu0
    %v721 = vadd.f32 0.0, %v720
    %v722 = vpop.f32.mrb[0].mxu0
    %723 = vdwg.mxu0
    %v724 = vmul.f32 %v618, %v618
    %v725 = vmul.f32 %v623, %v623
    %v726 = vmul.f32 %v628, %v628
    %v727 = vmul.f32 %v633, %v633
    %v728 = vsel %vm43, %v724, 0.0
    %v729 = vsel %vm43, %v725, 0.0
    %v730 = vadd.f32 %v728, %v729
    %v731 = vsel %vm43, %v726, 0.0
    %v732 = vadd.f32 %v730, %v731
    %v733 = vsel %vm43, %v727, 0.0
    %v734 = vadd.f32 %v732, %v733
    %v735 = vrot.slane %v734, 4
    %v736 = vadd.f32 %v734, %v735
    %v737 = vrot.slane %v736, 2
    %v738 = vadd.f32 %v736, %v737
    %v739 = vrot.slane %v738, 1
    %v740 = vadd.f32 %v738, %v739
    %v742 = vsel %vm43, %v740, 0
    %744 = vmatprep.subr.mxu0 0.0
    %745 = vmatpush1.msra.mxu0 %v30
    %746 = vmatprep.subr.mxu0 0.0
    %747 = vmatpush1.msra.mxu0 %v31
    %748 = vmatprep.subr.mxu0 0.0
    %749 = vmatpush1.msra.mxu0 %v32
    %750 = vmatprep.subr.mxu0 0.0
    %751 = vmatpush1.msra.mxu0 %v33
    %752 = vmatprep.subr.mxu0 0.0
    %753 = vmatpush1.msra.mxu0 %v34
    %754 = vmatprep.subr.mxu0 0.0
    %755 = vmatpush1.msra.mxu0 %v35
    %756 = vmatprep.subr.mxu0 0.0
    %757 = vmatpush1.msra.mxu0 %v36
    %758 = vmatprep.subr.mxu0 0.0
    %759 = vmatpush1.msra.mxu0 %v37
    %760 = vmatprep.subr.mxu0 0.0
    %761 = vmatpush1.msra.mxu0 0.0
    %762 = vmatprep.subr.mxu0 0.0
    %763 = vmatpush1.msra.mxu0 0.0
    %764 = vmatprep.subr.mxu0 0.0
    %765 = vmatpush1.msra.mxu0 0.0
    %766 = vmatprep.subr.mxu0 0.0
    %767 = vmatpush1.msra.mxu0 0.0
    %768 = vmatprep.subr.mxu0 0.0
    %769 = vmatpush1.msra.mxu0 0.0
    %770 = vmatprep.subr.mxu0 0.0
    %771 = vmatpush1.msra.mxu0 0.0
    %772 = vmatprep.subr.mxu0 0.0
    %773 = vmatpush1.msra.mxu0 0.0
    %774 = vmatprep.subr.mxu0 0.0
    %775 = vmatpush1.msra.mxu0 0.0
    %776 = vmatprep.subr.mxu0 0.0
    %777 = vmatpush1.msra.mxu0 0.0
    %778 = vmatprep.subr.mxu0 0.0
    %779 = vmatpush1.msra.mxu0 0.0
    %780 = vmatprep.subr.mxu0 0.0
    %781 = vmatpush1.msra.mxu0 0.0
    %782 = vmatprep.subr.mxu0 0.0
    %783 = vmatpush1.msra.mxu0 0.0
    %784 = vmatprep.subr.mxu0 0.0
    %785 = vmatpush1.msra.mxu0 0.0
    %786 = vmatprep.subr.mxu0 0.0
    %787 = vmatpush1.msra.mxu0 0.0
    %788 = vmatprep.subr.mxu0 0.0
    %789 = vmatpush1.msra.mxu0 0.0
    %790 = vmatprep.subr.mxu0 0.0
    %791 = vmatpush1.msra.mxu0 0.0
    %792 = vmatprep.subr.mxu0 0.0
    %793 = vmatpush1.msra.mxu0 0.0
    %794 = vmatprep.subr.mxu0 0.0
    %795 = vmatpush1.msra.mxu0 0.0
    %796 = vmatprep.subr.mxu0 0.0
    %797 = vmatpush1.msra.mxu0 0.0
    %798 = vmatprep.subr.mxu0 0.0
    %799 = vmatpush1.msra.mxu0 0.0
    %800 = vmatprep.subr.mxu0 0.0
    %801 = vmatpush1.msra.mxu0 0.0
    %802 = vmatprep.subr.mxu0 0.0
    %803 = vmatpush1.msra.mxu0 0.0
    %804 = vmatprep.subr.mxu0 0.0
    %805 = vmatpush1.msra.mxu0 0.0
    %806 = vmatprep.subr.mxu0 0.0
    %807 = vmatpush1.msra.mxu0 0.0
    %808 = vmatprep.mubr.f32.mxu0 0.0
    %809 = vmatmul.mubr.f32.gmra.mrb[0].mxu0 %v742
    %v810 = vpop.f32.mrb[0].mxu0
    %v811 = vadd.f32 0.0, %v810
    %v812 = vpop.f32.mrb[0].mxu0
    %813 = vdwg.mxu0
    %v814 = vmul.f32 %v721, 0.001953125
    %v815 = vmul.f32 %v811, 0.001953125
    %v816 = vmul.f32 %v814, %v814
    %v817 = vsub.f32 %v815, %v816
    %v818 = vadd.f32 %v817, 1e-05
    %v819 = vrsqrt.pop %v818
    %v820 = vmul.f32 %v636, %v819
    %v821 = vmul.f32 %v814, %v820
    %v822 = vsub.f32 %v637, %v821
    %v824 = vlaneseq
    %v825 = vshrl.u32 %v824, 7
    %v826 = vsub.s32 0, %v825
    %v827 = vrot.slane %v820, %v826
    %v829 = vmul.f32 %v618, %v827
    %v830 = vmul.f32 %v623, %v827
    %v831 = vmul.f32 %v628, %v827
    %v832 = vmul.f32 %v633, %v827
    %v834 = vlaneseq
    %v835 = vshrl.u32 %v834, 7
    %v836 = vsub.s32 0, %v835
    %v837 = vrot.slane %v822, %v836
    %v839 = vadd.f32 %v829, %v837
    %v840 = vadd.f32 %v830, %v837
    %v841 = vadd.f32 %v831, %v837
    %v842 = vadd.f32 %v832, %v837
    %v843 = vadd.f32 %v839, %v38
    %v844 = vadd.f32 %v840, %v39
    %v845 = vadd.f32 %v841, %v40
    %v846 = vadd.f32 %v842, %v41
    %v847 = vmax.f32 %v843, 0.0
    %v848 = vmax.f32 %v844, 0.0
    %v849 = vmax.f32 %v845, 0.0
    %v850 = vmax.f32 %v846, 0.0
    %851 = vst.msk [vmem:[#allocation3] sm:$0xff] %vm43, %v847
    %852 = vst.msk [vmem:[#allocation3 + $0x8] sm:$0xff] %vm43, %v848
    %853 = vst.msk [vmem:[#allocation3 + $0x10] sm:$0xff] %vm43, %v849
    %854 = vst.msk [vmem:[#allocation3 + $0x18] sm:$0xff] %vm43, %v850
    // Predicated region
    $region34: #{tpu_custom_call.1} parent=1 // pred_check
      _
    $region35: #{tpu_custom_call.1} parent=1 // pred_check_branch
      %856 = sbr.rel (0) target = $region37
    $region36: #{tpu_custom_call.1} parent=1 // pred_region
      %s858 = ssub.s32 512, 512
      %859 = vsyncadd [#allocation4], %s858
      %s860 = sshll.u32 [#allocation3], 4
      %s861 = int_to_ptr.vmem [resolvable:$true] %s860
      %866 = dma.vmem_to_hbm [thread:$0]  %s861, 512, %s8, [#allocation4], 128, 128, 8
    $region37: #{tpu_custom_call.1} parent=1 // pred_fallthru
      _
    // Predicated region
    $region38: #{tpu_custom_call.1} parent=1 // pred_check
      _
    $region39: #{tpu_custom_call.1} parent=1 // pred_check_branch
      %868 = sbr.rel (0) target = $region41
    $region40: #{tpu_custom_call.1} parent=1 // pred_region
      %869 = dma.done [#allocation4], 512
    $region41: #{tpu_custom_call.1} parent=1 // pred_fallthru
      _
    %870 = vsyncpa [#allocation4], 1

</llo_original>
